<compile_context>
chip_gen: v6e
topology: v6e:2x2x1
jax: 0.10.0
libtpu: 0.0.40
codegen_flags: <defaults>
</compile_context>

<pallas_src>
import functools

import jax
import jax.numpy as jnp
from jax import lax
from jax.experimental import pallas as pl
from jax.experimental.pallas import tpu as pltpu


# --------------------------- tiling / VMEM sizing ---------------------------

def _vmem_capacity_bytes():
    """Physical per-core VMEM; conservative fallback = 64 MiB (v7x per-TC)."""
    try:
        cap = int(pltpu.get_tpu_info().vmem_capacity_bytes)
        if cap > 0:
            return cap
    except Exception:
        pass
    return 64 * 1024 * 1024


def _choose_tile_m(batch, classes, itemsize, n_inputs, vmem_cap):
    """Pick the row-tile height TM from the input dtype and chip generation."""
    # Per-input streamed-tile byte budget (in the *input* dtype):
    #   v5e/v6e (128 MiB VMEM): big tiles amortize the ~0.35us/step overhead
    #   and keep each DMA well above 1 MiB (HBM roofline needs 512+ rows).
    #   v7x (64 MiB VMEM): smaller budget, esp. with 4 multi-view streams.
    big_vmem = vmem_cap >= (100 << 20)
    per_input_budget = (8 << 20) if big_vmem else (3 << 20)

    in_bytes_per_row = classes * itemsize
    # Full per-row footprint: n_inputs double-buffered input tiles plus ~4 f32
    # (TM, C) temporaries (mask w, xs, exp(xs), products). Keep the total under
    # half of physical VMEM.
    total_bytes_per_row = n_inputs * 2 * in_bytes_per_row + 4 * 4 * classes

    tm = min(per_input_budget // max(in_bytes_per_row, 1),
             (vmem_cap // 2) // max(total_bytes_per_row, 1))

    # Round to the dtype-native packed sublane multiple (f32:8, bf16:16, i8:32).
    sub = max(8, 32 // max(itemsize, 1))
    tm = max(sub, min(4096, (tm // sub) * sub))
    if batch <= tm:
        return batch          # one full-extent tile: no padding, no (8,128) issue
    return tm


# --------------------------------- kernel -----------------------------------

def _breast_clip_kernel(*refs, weights, label_smoothing, batch, tile_m):
    n = len(weights)
    in_refs = refs[:n]
    out_ref = refs[n]                       # (1, 1, 128) f32 partial-sum block

    i = pl.program_id(0)
    row_offset = i * tile_m
    tm, c = in_refs[0].shape

    # ---- per-step constants, built ONCE and shared across all logits streams
    # (JAX does not CSE iota/broadcast; previously this VPU work was replicated
    # per input, 2-4x).
    row_ids = lax.broadcasted_iota(jnp.int32, (tm, c), 0)
    col_ids = lax.broadcasted_iota(jnp.int32, (tm, c), 1)
    uni = jnp.float32(label_smoothing / c)                        # eps / C
    hit = jnp.float32(1.0 - label_smoothing + label_smoothing / c)
    w = jnp.where(col_ids == row_ids + row_offset, hit, uni)      # (tm, c) f32

    # ---- per-input streaming CE, accumulated per-row in f32.
    partial_rows = jnp.zeros((tm, 1), jnp.float32)
    for ref, wgt in zip(in_refs, weights):
        x = ref[...]                                   # native dtype (bf16 ok)
        m = jnp.max(x, axis=-1, keepdims=True)         # exact in native dtype
        xs = (x - m).astype(jnp.float32)               # cast after cheap pass
        lse = jnp.log(jnp.sum(jnp.exp(xs), axis=-1, keepdims=True))
        tgt = jnp.sum(w * xs, axis=-1, keepdims=True)  # fused smoothed target
        # nll = logsumexp(x) - sum_c q_c x_c ; the row max cancels (sum q = 1).
        partial_rows = partial_rows + jnp.float32(wgt) * (lse - tgt)

    # ---- mask padded rows of the last tile (select => garbage NaN/inf in the
    # unselected branch cannot propagate), then one cross-sublane reduce and
    # one lane-dense splat store per step.
    if batch % tile_m != 0:
        row_valid = (lax.broadcasted_iota(jnp.int32, (tm, 1), 0)
                     + row_offset) < batch
        partial_rows = jnp.where(row_valid, partial_rows, jnp.float32(0.0))

    out_ref[...] = jnp.broadcast_to(jnp.sum(partial_rows), (1, 1, 128))


# ------------------------------- host wrapper --------------------------------

def _fused_ce_loss(inputs, weights, final_scale, label_smoothing, tile_m=None):
    """sum_n weights[n] * mean_CE(inputs[n], arange(B)) * final_scale,
    computed in one streaming Pallas pass over all logits matrices."""
    inputs = tuple(inputs)
    assert len(inputs) == len(weights)
    shapes = {tuple(x.shape) for x in inputs}
    assert len(shapes) == 1, "fused loss requires equal logits shapes"
    B, C = inputs[0].shape
    assert C >= B, "targets=arange(B) requires at least B classes"

    itemsize = max(jnp.dtype(x.dtype).itemsize for x in inputs)
    vmem_cap = _vmem_capacity_bytes()
    TM = (_choose_tile_m(B, C, itemsize, len(inputs), vmem_cap)
          if tile_m is None else int(tile_m))
    num_tiles = pl.cdiv(B, TM)

    kernel = functools.partial(
        _breast_clip_kernel,
        weights=tuple(float(w) for w in weights),
        label_smoothing=float(label_smoothing),
        batch=B,
        tile_m=TM,
    )

    total_elems = sum(int(x.size) for x in inputs)
    cost = pl.CostEstimate(
        flops=7 * total_elems,
        transcendentals=total_elems,
        bytes_accessed=(sum(int(x.size) * x.dtype.itemsize for x in inputs)
                        + num_tiles * 128 * 4),
    )

    # VMEM limit derived from the real footprint and the physical capacity
    # (64 MiB on v7x, 128 MiB on v5e/v6e) instead of a hard-coded constant.
    footprint = (len(inputs) * 2 * TM * C * itemsize   # double-buffered inputs
                 + 4 * TM * C * 4                      # f32 temporaries
                 + (2 << 20))                          # slack
    vmem_limit = min(int(vmem_cap * 3 // 4),
                     max(32 << 20, footprint + (8 << 20)))

    partials = pl.pallas_call(
        kernel,
        out_shape=jax.ShapeDtypeStruct((num_tiles, 1, 128), jnp.float32),
        grid=(num_tiles,),
        in_specs=[pl.BlockSpec((TM, C), lambda i: (i, 0)) for _ in inputs],
        # Lane-dense per-tile partial sums; each grid step writes its own
        # block, so the row-tile axis is truly parallel (both v7x TCs usable).
        out_specs=pl.BlockSpec((1, 1, 128), lambda i: (i, 0, 0)),
        compiler_params=pltpu.CompilerParams(
            dimension_semantics=("parallel",),
            vmem_limit_bytes=vmem_limit),
        cost_estimate=cost,
    )(*inputs)

    # Tiny finishing reduction + mean/scale done in XLA (num_tiles elements).
    return jnp.sum(partials[:, 0, 0]) * jnp.float32(final_scale / B)


class BreastClipLossPallas:
    """JAX/Pallas re-implementation of the PyTorch BreastClipLoss module."""

    def __init__(self, label_smoothing=0.0, i2i_weight=1.0, t2t_weight=0.5,
                 loss_ratio=1.0, multi_view=False, view_weights=(0.5, 0.5)):
        self.label_smoothing = float(label_smoothing)
        self.i2i_weight = float(i2i_weight)
        self.t2t_weight = float(t2t_weight)
        self.loss_ratio = float(loss_ratio)
        self.multi_view = bool(multi_view)
        self.view_weights = tuple(float(w) for w in view_weights)

    def __call__(self, *args):
        if not self.multi_view:
            logits_per_image, logits_per_text = args
            return _fused_ce_loss(
                (logits_per_image, logits_per_text),
                weights=(self.i2i_weight, self.t2t_weight),
                final_scale=self.loss_ratio,
                label_smoothing=self.label_smoothing)

        if len(args) != 4:
            raise ValueError(
                "Multi-view loss requires 4 inputs: i2t1, t2i1, i2t2, t2i2")
        w1, w2 = self.view_weights
        lr = self.loss_ratio
        if all(a.shape == args[0].shape for a in args[1:]):
            # Fuse both views into ONE pallas_call / one HBM pass:
            # total = lr * [ w1*lr*(i2i*ce_a + t2t*ce_b)
            #              + w2*lr*(i2i*ce_c + t2t*ce_d) ]
            return _fused_ce_loss(
                args,
                weights=(w1 * lr * self.i2i_weight, w1 * lr * self.t2t_weight,
                         w2 * lr * self.i2i_weight, w2 * lr * self.t2t_weight),
                final_scale=lr,
                label_smoothing=self.label_smoothing)
        # Fallback when view shapes differ: two fused calls.
        l1 = _fused_ce_loss((args[0], args[1]),
                            (self.i2i_weight, self.t2t_weight),
                            lr, self.label_smoothing)
        l2 = _fused_ce_loss((args[2], args[3]),
                            (self.i2i_weight, self.t2t_weight),
                            lr, self.label_smoothing)
        return (w1 * l1 + w2 * l2) * lr


# ----------------------------- pure-jnp reference ---------------------------

def _ref_ce(x, label_smoothing):
    B, C = x.shape
    logp = jax.nn.log_softmax(x.astype(jnp.float32), axis=-1)
    onehot = jnp.eye(B, C, dtype=jnp.float32)
    q = (1.0 - label_smoothing) * onehot + label_smoothing / C
    return -jnp.mean(jnp.sum(q * logp, axis=-1))


def _ref_single(lpi, lpt, label_smoothing, i2i_w, t2t_w, loss_ratio):
    return (i2i_w * _ref_ce(lpi, label_smoothing) +
            t2t_w * _ref_ce(lpt, label_smoothing)) * loss_ratio


def _ref_multi(a, b, c, d, label_smoothing, i2i_w, t2t_w, loss_ratio, vw):
    l1 = _ref_single(a, b, label_smoothing, i2i_w, t2t_w, loss_ratio)
    l2 = _ref_single(c, d, label_smoothing, i2i_w, t2t_w, loss_ratio)
    return (vw[0] * l1 + vw[1] * l2) * loss_ratio


# ----------------------------------- demo -----------------------------------

if __name__ == "__main__":
    key = jax.random.PRNGKey(0)
    ks = jax.random.split(key, 8)

    # --- check 1: single view, f32, B = C = 8 (one full-extent tile) --------
    B = 8
    lpi = jax.random.normal(ks[0], (B, B), dtype=jnp.float32) * 3.0
    lpt = lpi.T + 0.1 * jax.random.normal(ks[1], (B, B), jnp.float32)

    loss_fn = BreastClipLossPallas(label_smoothing=0.1, i2i_weight=1.0,
                                   t2t_weight=0.5, loss_ratio=1.0,
                                   multi_view=False)
    loss = jax.block_until_ready(loss_fn(lpi, lpt))
    ref = _ref_single(lpi, lpt, 0.1, 1.0, 0.5, 1.0)
    assert jnp.allclose(loss, ref, atol=1e-4, rtol=1e-4), (loss, ref)

    # --- check 2: bf16, multi-tile grid with padded last tile ---------------
    # tile_m=16 is the bf16-native packed sublane multiple; 40 rows -> 3 tiles
    # with the last one padded/masked.  bf16 tolerance.
    B2, C2 = 40, 48
    lpi2 = (jax.random.normal(ks[2], (B2, C2), jnp.float32) * 2.0).astype(jnp.bfloat16)
    lpt2 = (jax.random.normal(ks[3], (B2, C2), jnp.float32) * 2.0).astype(jnp.bfloat16)
    loss2 = _fused_ce_loss((lpi2, lpt2), weights=(1.0, 0.5), final_scale=1.0,
                           label_smoothing=0.05, tile_m=16)
    loss2 = jax.block_until_ready(loss2)
    ref2 = _ref_single(lpi2, lpt2, 0.05, 1.0, 0.5, 1.0)
    assert jnp.allclose(loss2, ref2, atol=5e-2, rtol=5e-2), (loss2, ref2)

    # --- check 3: multi-view, fused into one pallas_call --------------------
    mv = [jax.random.normal(ks[4 + j], (B, B), jnp.float32) for j in range(4)]
    mv_fn = BreastClipLossPallas(label_smoothing=0.1, i2i_weight=1.0,
                                 t2t_weight=0.5, loss_ratio=0.8,
                                 multi_view=True, view_weights=(0.6, 0.4))
    loss3 = jax.block_until_ready(mv_fn(*mv))
    ref3 = _ref_multi(*mv, label_smoothing=0.1, i2i_w=1.0, t2t_w=0.5,
                      loss_ratio=0.8, vw=(0.6, 0.4))
    assert jnp.allclose(loss3, ref3, atol=1e-4, rtol=1e-4), (loss3, ref3)

    print("KERNEL_OK")
</pallas_src>

<mosaic_0001>
module attributes {stable_mosaic.version = 11 : i64} {
  func.func @_breast_clip_kernel(%arg0: i32, %arg1: memref<8x8xf32, #tpu.memory_space<vmem>>, %arg2: memref<8x8xf32, #tpu.memory_space<vmem>>, %arg3: memref<1x1x128xf32, #tpu.memory_space<vmem>>) attributes {dimension_semantics = [#tpu.dimension_semantics<parallel>], iteration_bounds = array<i64: 1>, scalar_prefetch = 0 : i64, scratch_operands = 0 : i64, tpu.core_type = #tpu.core_type<tc>, window_params = [{transform_indices = @transform_0, window_bounds = array<i64: 8, 8>}, {transform_indices = @transform_1, window_bounds = array<i64: 8, 8>}, {transform_indices = @transform_2, window_bounds = array<i64: 1, 1, 128>}]} {
    %c8_i32 = arith.constant 8 : i32
    %0 = arith.muli %arg0, %c8_i32 : i32
    %1 = tpu.iota {dimensions = array<i32: 0>} : vector<8x8xi32>
    %2 = tpu.iota {dimensions = array<i32: 1>} : vector<8x8xi32>
    %3 = vector.broadcast %0 : i32 to vector<8x8xi32>
    %4 = arith.addi %1, %3 : vector<8x8xi32>
    %5 = arith.cmpi eq, %2, %4 : vector<8x8xi32>
    %cst = arith.constant 9.125000e-01 : f32
    %cst_0 = arith.constant 1.250000e-02 : f32
    %6 = vector.broadcast %cst : f32 to vector<8x8xf32>
    %7 = vector.broadcast %cst_0 : f32 to vector<8x8xf32>
    %8 = arith.select %5, %6, %7 : vector<8x8xi1>, vector<8x8xf32>
    %cst_1 = arith.constant 0.000000e+00 : f32
    %9 = vector.broadcast %cst_1 : f32 to vector<8x1xf32>
    %c0 = arith.constant 0 : index
    %c0_2 = arith.constant 0 : index
    %10 = vector.load %arg1[%c0, %c0_2] : memref<8x8xf32, #tpu.memory_space<vmem>>, vector<8x8xf32>
    %cst_3 = arith.constant dense<0xFF800000> : vector<8xf32>
    %11 = vector.multi_reduction <maximumf>, %10, %cst_3 [1] : vector<8x8xf32> to vector<8xf32>
    %12 = vector.shape_cast %11 : vector<8xf32> to vector<8x1xf32>
    %13 = vector.broadcast %12 : vector<8x1xf32> to vector<8x8xf32>
    %14 = arith.subf %10, %13 : vector<8x8xf32>
    %15 = math.exp %14 : vector<8x8xf32>
    %cst_4 = arith.constant dense<0.000000e+00> : vector<8xf32>
    %16 = vector.multi_reduction <add>, %15, %cst_4 [1] : vector<8x8xf32> to vector<8xf32>
    %17 = vector.shape_cast %16 : vector<8xf32> to vector<8x1xf32>
    %18 = math.log %17 : vector<8x1xf32>
    %19 = arith.mulf %8, %14 : vector<8x8xf32>
    %cst_5 = arith.constant dense<0.000000e+00> : vector<8xf32>
    %20 = vector.multi_reduction <add>, %19, %cst_5 [1] : vector<8x8xf32> to vector<8xf32>
    %21 = vector.shape_cast %20 : vector<8xf32> to vector<8x1xf32>
    %22 = arith.subf %18, %21 : vector<8x1xf32>
    %cst_6 = arith.constant 1.000000e+00 : f32
    %23 = vector.broadcast %cst_6 : f32 to vector<8x1xf32>
    %24 = arith.mulf %23, %22 : vector<8x1xf32>
    %25 = arith.addf %9, %24 : vector<8x1xf32>
    %c0_7 = arith.constant 0 : index
    %c0_8 = arith.constant 0 : index
    %26 = vector.load %arg2[%c0_7, %c0_8] : memref<8x8xf32, #tpu.memory_space<vmem>>, vector<8x8xf32>
    %cst_9 = arith.constant dense<0xFF800000> : vector<8xf32>
    %27 = vector.multi_reduction <maximumf>, %26, %cst_9 [1] : vector<8x8xf32> to vector<8xf32>
    %28 = vector.shape_cast %27 : vector<8xf32> to vector<8x1xf32>
    %29 = vector.broadcast %28 : vector<8x1xf32> to vector<8x8xf32>
    %30 = arith.subf %26, %29 : vector<8x8xf32>
    %31 = math.exp %30 : vector<8x8xf32>
    %cst_10 = arith.constant dense<0.000000e+00> : vector<8xf32>
    %32 = vector.multi_reduction <add>, %31, %cst_10 [1] : vector<8x8xf32> to vector<8xf32>
    %33 = vector.shape_cast %32 : vector<8xf32> to vector<8x1xf32>
    %34 = math.log %33 : vector<8x1xf32>
    %35 = arith.mulf %8, %30 : vector<8x8xf32>
    %cst_11 = arith.constant dense<0.000000e+00> : vector<8xf32>
    %36 = vector.multi_reduction <add>, %35, %cst_11 [1] : vector<8x8xf32> to vector<8xf32>
    %37 = vector.shape_cast %36 : vector<8xf32> to vector<8x1xf32>
    %38 = arith.subf %34, %37 : vector<8x1xf32>
    %cst_12 = arith.constant 5.000000e-01 : f32
    %39 = vector.broadcast %cst_12 : f32 to vector<8x1xf32>
    %40 = arith.mulf %39, %38 : vector<8x1xf32>
    %41 = arith.addf %25, %40 : vector<8x1xf32>
    %42 = vector.shape_cast %41 : vector<8x1xf32> to vector<1x8x1xf32>
    %cst_13 = arith.constant dense<0.000000e+00> : vector<1xf32>
    %43 = vector.multi_reduction <add>, %42, %cst_13 [1, 2] : vector<1x8x1xf32> to vector<1xf32>
    %44 = vector.shape_cast %43 : vector<1xf32> to vector<1x1x1xf32>
    %45 = vector.extract %44[0, 0, 0] : f32 from vector<1x1x1xf32>
    %46 = vector.broadcast %45 : f32 to vector<1x1x128xf32>
    %c0_14 = arith.constant 0 : index
    %c0_15 = arith.constant 0 : index
    %c0_16 = arith.constant 0 : index
    %47 = vector.load %arg3[%c0_14, %c0_15, %c0_16] : memref<1x1x128xf32, #tpu.memory_space<vmem>>, vector<1x1x128xf32>
    tpu.vector_store %arg3[%c0_14, %c0_15, %c0_16], %46 {strides = array<i32>} : memref<1x1x128xf32, #tpu.memory_space<vmem>>, vector<1x1x128xf32>,
    return
  }
  func.func @transform_0(%arg0: i32) -> (i32, i32) {
    %c0_i32 = arith.constant 0 : i32
    %c0_i32_0 = arith.constant 0 : i32
    return %arg0, %c0_i32 : i32, i32
  }
  func.func @transform_1(%arg0: i32) -> (i32, i32) {
    %c0_i32 = arith.constant 0 : i32
    %c0_i32_0 = arith.constant 0 : i32
    return %arg0, %c0_i32 : i32, i32
  }
  func.func @transform_2(%arg0: i32) -> (i32, i32, i32) {
    %c0_i32 = arith.constant 0 : i32
    %c0_i32_0 = arith.constant 0 : i32
    %c0_i32_1 = arith.constant 0 : i32
    return %arg0, %c0_i32, %c0_i32_0 : i32, i32, i32
  }
}

</mosaic_0001>

<llo_original>
// kernel: tpu_custom_call.1
$region0: #{tpu_custom_call.1}
  #allocation0 [shape = 'u32[]', space=smem, size = 0x4, offset = 0x4, fixed_abs, tag = 'smem constant byte address 0x4 - core index']
  #allocation1 [shape = 'u32[144,128]{1,0:T(1,128)}', space=vmem, size = 0x12000, scoped, tag = 'internal scratch']
  %s0 = inlined_call_operand.hbm [shape: f32[8,8], index: 0, kind: input, shape index: {}]
  %s1 = inlined_call_operand.hbm [shape: f32[8,8], index: 1, kind: input, shape index: {}]
  %s2 = inlined_call_operand.hbm [shape: f32[1,1,128], index: 2, kind: output, shape index: {}]
  %s3 = sld [smem:[#allocation0]]
  $region26: #{tpu_custom_call.1} parent=0
    _
  %s5 = ssub.s32 1, %s3
  %s6 = scalar_select 0, %s5, %s3
  $region1: #{tpu_custom_call.1} parent=0
    #allocation2 [shape = 'u8[4096]{0}', space=vmem, size = 0x1000, scoped, tag = 'input window, operand 0, single buffered']
    #allocation3 [shape = 's32[1]{0}', space=sflag, size = 0x4, scoped, tag = 'scoped memory for tpu_custom_call.1']
    #allocation4 [shape = 's32[1]{0}', space=sflag, size = 0x4, scoped, tag = 'scoped memory for tpu_custom_call.1']
    #allocation5 [shape = 'u8[4096]{0}', space=vmem, size = 0x1000, scoped, tag = 'input window, operand 1, single buffered']
    #allocation6 [shape = 's32[1]{0}', space=sflag, size = 0x4, scoped, tag = 'scoped memory for tpu_custom_call.1']
    #allocation7 [shape = 'u8[512]{0}', space=vmem, size = 0x400, scoped, tag = 'output window, operand 0, single buffered']
    %7 = vsyncpa [#allocation3], 0
    %8 = vsyncpa [#allocation6], 0
    %9 = vsyncpa [#allocation4], 0
    // Predicated region
    $region2: #{tpu_custom_call.1} parent=1 // pred_check
      _
    $region3: #{tpu_custom_call.1} parent=1 // pred_check_branch
      %11 = sbr.rel (0) target = $region5
    $region4: #{tpu_custom_call.1} parent=1 // pred_region
      %s13 = ssub.s32 128, 128
      %14 = vsyncadd [#allocation3], %s13
      %s16 = sshll.u32 [#allocation2], 4
      %s17 = int_to_ptr.vmem [resolvable:$true] %s16
      %19 = dma.hbm_to_vmem [thread:$0]  %s0, 128, %s17, [#allocation3]
    $region5: #{tpu_custom_call.1} parent=1 // pred_fallthru
      _
    // Predicated region
    $region6: #{tpu_custom_call.1} parent=1 // pred_check
      _
    $region7: #{tpu_custom_call.1} parent=1 // pred_check_branch
      %21 = sbr.rel (0) target = $region9
    $region8: #{tpu_custom_call.1} parent=1 // pred_region
      %s23 = ssub.s32 128, 128
      %24 = vsyncadd [#allocation6], %s23
      %s26 = sshll.u32 [#allocation5], 4
      %s27 = int_to_ptr.vmem [resolvable:$true] %s26
      %29 = dma.hbm_to_vmem [thread:$0]  %s1, 128, %s27, [#allocation6]
    $region9: #{tpu_custom_call.1} parent=1 // pred_fallthru
      _
    // Predicated region
    $region10: #{tpu_custom_call.1} parent=1 // pred_check
      _
    $region11: #{tpu_custom_call.1} parent=1 // pred_check_branch
      %31 = sbr.rel (0) target = $region13
    $region12: #{tpu_custom_call.1} parent=1 // pred_region
      %32 = dma.done [#allocation3], 128
    $region13: #{tpu_custom_call.1} parent=1 // pred_fallthru
      _
    // Predicated region
    $region14: #{tpu_custom_call.1} parent=1 // pred_check
      _
    $region15: #{tpu_custom_call.1} parent=1 // pred_check_branch
      %34 = sbr.rel (0) target = $region17
    $region16: #{tpu_custom_call.1} parent=1 // pred_region
      %35 = dma.done [#allocation6], 128
    $region17: #{tpu_custom_call.1} parent=1 // pred_fallthru
      _
    %s36 = smul.u32 0, 8
    %v37 = vlaneseq
    %v38 = vshrl.u32 %v37, 7
    %v39 = vlaneseq
    %v40 = vand.u32 %v39, 127
    %v41 = vstv %s36
    %v42 = vadd.s32 %v38, %v41
    %vm43 = vcmp.eq.s32.totalorder %v40, %v42
    %v44 = vsel %vm43, 0.9125, 0.0125
    %v45 = vld [vmem:[#allocation2] sm:$0xff]
    %vm46 = vcmask 64512
    %v47 = vsel %vm46, %v45, -inf
    %48 = vmax.xlane.f32.xlu0 %v47
    %v49 = vpop.xlane.xlu0 %48
    %v50 = vsub.f32 %v45, %v49
    %v51 = vmul.f32 %v50, 1.442695
    %v52 = vpow.pop %v51
    %v53 = vsel %vm46, %v52, 0.0
    %54 = vadd.xlane.f32.xlu0 %v53
    %v55 = vpop.xlane.xlu0 %54
    %v56 = vlog2.pop %v55
    %v57 = vmul.f32 %v56, 0.6931472
    %v58 = vmul.f32 %v44, %v50
    %v59 = vsel %vm46, %v58, 0.0
    %60 = vadd.xlane.f32.xlu0 %v59
    %v61 = vpop.xlane.xlu0 %60
    %v62 = vsub.f32 %v57, %v61
    %v63 = vadd.f32 %v62, 0.0
    %v64 = vld [vmem:[#allocation5] sm:$0xff]
    %v65 = vsel %vm46, %v64, -inf
    %66 = vmax.xlane.f32.xlu0 %v65
    %v67 = vpop.xlane.xlu0 %66
    %v68 = vsub.f32 %v64, %v67
    %v69 = vmul.f32 %v68, 1.442695
    %v70 = vpow.pop %v69
    %v71 = vsel %vm46, %v70, 0.0
    %72 = vadd.xlane.f32.xlu0 %v71
    %v73 = vpop.xlane.xlu0 %72
    %v74 = vlog2.pop %v73
    %v75 = vmul.f32 %v74, 0.6931472
    %v76 = vmul.f32 %v44, %v68
    %v77 = vsel %vm46, %v76, 0.0
    %78 = vadd.xlane.f32.xlu0 %v77
    %v79 = vpop.xlane.xlu0 %78
    %v80 = vsub.f32 %v75, %v79
    %v81 = vmul.f32 %v80, 0.5
    %v82 = vadd.f32 %v63, %v81
    %vm83 = vcmask 7168
    %v84 = vsel %vm83, %v82, 0.0
    %85 = vadd.xlane.f32.xlu0 %v84
    %v86 = vpop.xlane.xlu0 %85
    %v87 = vrot.slane %v86, 4
    %v88 = vadd.f32 %v86, %v87
    %v89 = vrot.slane %v88, 2
    %v90 = vadd.f32 %v88, %v89
    %v91 = vrot.slane %v90, 1
    %v92 = vadd.f32 %v90, %v91
    %s93 = vtos %v92
    %v94 = vstv %s93
    %95 = vst [vmem:[#allocation7] sm:$0x1] %v94
    // Predicated region
    $region18: #{tpu_custom_call.1} parent=1 // pred_check
      _
    $region19: #{tpu_custom_call.1} parent=1 // pred_check_branch
      %97 = sbr.rel (0) target = $region21
    $region20: #{tpu_custom_call.1} parent=1 // pred_region
      %s99 = ssub.s32 16, 16
      %100 = vsyncadd [#allocation4], %s99
      %s102 = sshll.u32 [#allocation7], 4
      %s103 = int_to_ptr.vmem [resolvable:$true] %s102
      %105 = dma.vmem_to_hbm [thread:$0]  %s103, 16, %s2, [#allocation4]
    $region21: #{tpu_custom_call.1} parent=1 // pred_fallthru
      _
    // Predicated region
    $region22: #{tpu_custom_call.1} parent=1 // pred_check
      _
    $region23: #{tpu_custom_call.1} parent=1 // pred_check_branch
      %107 = sbr.rel (0) target = $region25
    $region24: #{tpu_custom_call.1} parent=1 // pred_region
      %108 = dma.done [#allocation4], 16
    $region25: #{tpu_custom_call.1} parent=1 // pred_fallthru
      _
    %109 = vsyncpa [#allocation3], 1
    %110 = vsyncpa [#allocation6], 1
    %111 = vsyncpa [#allocation4], 1

</llo_original>
